<compile_context>
chip_gen: v6e
topology: v6e:2x2x1
jax: 0.10.0
libtpu: 0.0.40
codegen_flags: <defaults>
</compile_context>

<pallas_src>
import jax
import jax.numpy as jnp
from jax import lax
from jax.experimental import pallas as pl
from jax.experimental.pallas import tpu as pltpu


def _round_up(x, m):
    return (x + m - 1) // m * m


def _layer_norm(x, gamma=None, beta=None, eps=1e-5):
    # torch.nn.LayerNorm(hidden_dim): biased variance over last dim, eps=1e-5.
    mean = jnp.mean(x, axis=-1, keepdims=True)
    cen = x - mean
    var = jnp.mean(cen * cen, axis=-1, keepdims=True)
    y = cen * lax.rsqrt(var + eps)
    if gamma is not None:
        y = y * gamma
    if beta is not None:
        y = y + beta
    return y


def _neural_lm3_kernel(idx_ref, w1f_ref, b1_ref,
                       w2_ref, b2_ref, g1_ref, be1_ref,
                       w3_ref, b3_ref,
                       w4_ref, b4_ref,
                       o_ref):
    TM, C = idx_ref.shape
    CV = w1f_ref.shape[0]
    V = CV // C                                   # static Python ints
    mm_dtype = w1f_ref.dtype                      # f32 (default) or bf16

    idx = idx_ref[...]                            # (TM, C) int32
    # One one-hot of shape (TM, C*V): context slot c hits lane idx[:,c] + c*V.
    lane = lax.broadcasted_iota(jnp.int32, (TM, CV), 1)
    hit = idx[:, 0:1] == lane
    for c in range(1, C):                         # C is small & static
        hit = hit | ((idx[:, c:c + 1] + c * V) == lane)
    one_hot = hit.astype(mm_dtype)                # exact in any dtype (0/1)

    # Fused embedding-gather + fc1 (single K=C*V, N=H MXU matmul) + ReLU.
    h1 = jnp.dot(one_hot, w1f_ref[...],
                 preferred_element_type=jnp.float32) + b1_ref[...]
    h1 = jnp.maximum(h1, 0.0)
    # fc2 + ReLU
    h2 = jnp.dot(h1.astype(w2_ref.dtype), w2_ref[...],
                 preferred_element_type=jnp.float32) + b2_ref[...]
    h2 = jnp.maximum(h2, 0.0)
    # TODO(synk): nn.Dropout(0.3) treated as inference-mode identity; training
    # mode would need pltpu.prng_seed / pltpu.prng_random_bits masking.
    h2 = _layer_norm(h1 + h2, g1_ref[...], be1_ref[...])
    # fc3 + ReLU
    h3 = jnp.dot(h2.astype(w3_ref.dtype), w3_ref[...],
                 preferred_element_type=jnp.float32) + b3_ref[...]
    h3 = jnp.maximum(h3, 0.0)
    # LayerNorm2 without affine: g2/beta2 were folded into fc4 in the wrapper.
    h3 = _layer_norm(h2 + h3)
    # fc4 (kept in f32 — logits feed the tolerance check).
    out = jnp.dot(h3, w4_ref[...], preferred_element_type=jnp.float32) + b4_ref[...]
    o_ref[...] = out.astype(o_ref.dtype)


def prepare_neural_lm3_params(emb, w1, b1, w2, b2, g1, beta1,
                              w3, b3, g2, beta2, w4, b4,
                              matmul_dtype=jnp.float32):
    """One-time weight preprocessing, hoisted out of the per-call forward.

    matmul_dtype=jnp.bfloat16 may be used on v6e/v7x for fc1-fc3 operands
    (re-validate against the 1e-3 reference check before enabling).
    """
    f32 = jnp.float32
    emb = emb.astype(f32)
    w1 = w1.astype(f32)
    V, E = emb.shape
    K, H = w1.shape
    C = K // E
    assert C * E == K

    # Fold frozen embedding gather into fc1:  W1f[c*V+v, :] = emb[v] @ w1[cE:(c+1)E, :]
    w1f = jnp.concatenate([emb @ w1[c * E:(c + 1) * E, :] for c in range(C)],
                          axis=0)                                   # (C*V, H)
    # Fold LayerNorm2's affine into fc4 (LN2's output only feeds fc4).
    w4 = w4.astype(f32)
    w4f = g2.astype(f32)[:, None] * w4
    b4f = b4.astype(f32) + beta2.astype(f32) @ w4

    row = lambda v: v.reshape(1, -1).astype(f32)    # lane-aligned 2-D params
    return dict(
        C=int(C), V=int(V), H=int(H),
        w1f=w1f.astype(matmul_dtype), b1=row(b1),
        w2=w2.astype(matmul_dtype), b2=row(b2),
        g1=row(g1), beta1=row(beta1),
        w3=w3.astype(matmul_dtype), b3=row(b3),
        w4=w4f, b4=row(b4f),
    )


def neural_lm3_forward(x_idx, params):
    """Pallas NeuralLM3.forward (inference).  x_idx: (B, C) int32 -> (B, V) f32."""
    B, C = x_idx.shape
    V, H = params["V"], params["H"]
    assert C == params["C"]
    CV = C * V

    # Batch tiling: one tile for tiny batches; for B >= 16 force >= 2 grid
    # steps (so both v7x TensorCores work); tiles grow to 512 rows at large
    # batch to amortize per-step overhead while everything stays well under
    # VMEM limits (one-hot ~C*V*TM*4 B, h1-h3 TM*H*4 B, logits TM*V*4 B).
    if B < 16:
        TM = _round_up(max(B, 1), 8)
    else:
        TM = min(512, _round_up(pl.cdiv(B, 2), 8))
    B_pad = _round_up(B, TM)
    x_pad = jnp.pad(x_idx.astype(jnp.int32), ((0, B_pad - B), (0, 0)))

    full = lambda shape: pl.BlockSpec(shape, lambda i: (0,) * len(shape))

    logits = pl.pallas_call(
        _neural_lm3_kernel,
        out_shape=jax.ShapeDtypeStruct((B_pad, V), jnp.float32),
        grid=(B_pad // TM,),
        in_specs=[
            pl.BlockSpec((TM, C), lambda i: (i, 0)),   # token indices per tile
            full((CV, H)), full((1, H)),               # folded emb+fc1
            full((H, H)),  full((1, H)),               # fc2
            full((1, H)),  full((1, H)),               # LayerNorm1 gamma/beta
            full((H, H)),  full((1, H)),               # fc3
            full((H, V)),  full((1, V)),               # fc4 (LN2 affine folded in)
        ],
        out_specs=pl.BlockSpec((TM, V), lambda i: (i, 0)),
        compiler_params=pltpu.CompilerParams(
            dimension_semantics=("parallel",)),
    )(x_pad,
      params["w1f"], params["b1"],
      params["w2"], params["b2"],
      params["g1"], params["beta1"],
      params["w3"], params["b3"],
      params["w4"], params["b4"])
    return logits[:B]


def _init_linear(key, fan_in, fan_out):
    # torch-style uniform(-1/sqrt(fan_in), 1/sqrt(fan_in)) init, y = x @ w + b.
    kw, kb = jax.random.split(key)
    bound = 1.0 / jnp.sqrt(jnp.float32(fan_in))
    w = jax.random.uniform(kw, (fan_in, fan_out), jnp.float32, -bound, bound)
    b = jax.random.uniform(kb, (fan_out,), jnp.float32, -bound, bound)
    return w, b


if __name__ == "__main__":
    # Small shapes consistent with the module:
    #   vocab_size=256, embedding_dim=32, hidden_dim=128, context_size=3
    V, E, H, C = 256, 32, 128, 3

    key = jax.random.PRNGKey(0)
    (k_emb, k_fc1, k_fc2, k_fc3, k_fc4,
     k_g1, k_b1, k_g2, k_b2, k_x) = jax.random.split(key, 10)

    emb = jax.random.normal(k_emb, (V, E), jnp.float32)       # frozen embeddings
    w1, b1 = _init_linear(k_fc1, C * E, H)
    w2, b2 = _init_linear(k_fc2, H, H)
    w3, b3 = _init_linear(k_fc3, H, H)
    w4, b4 = _init_linear(k_fc4, H, V)
    g1 = 1.0 + 0.1 * jax.random.normal(k_g1, (H,), jnp.float32)
    beta1 = 0.1 * jax.random.normal(k_b1, (H,), jnp.float32)
    g2 = 1.0 + 0.1 * jax.random.normal(k_g2, (H,), jnp.float32)
    beta2 = 0.1 * jax.random.normal(k_b2, (H,), jnp.float32)

    # One-time preprocessing (embedding fold, LN2 fold, casts) — hoisted.
    params = prepare_neural_lm3_params(emb, w1, b1, w2, b2, g1, beta1,
                                       w3, b3, g2, beta2, w4, b4)

    # Pure-JAX reference of the original (un-folded) forward, dropout = identity.
    def reference(x_idx):
        def ln(x, g, b, eps=1e-5):
            m = x.mean(-1, keepdims=True)
            v = ((x - m) ** 2).mean(-1, keepdims=True)
            return (x - m) / jnp.sqrt(v + eps) * g + b
        B = x_idx.shape[0]
        e = jnp.take(emb, x_idx, axis=0).reshape(B, C * E)
        r1 = jnp.maximum(e @ w1 + b1, 0.0)
        r2 = jnp.maximum(r1 @ w2 + b2, 0.0)
        r2 = ln(r1 + r2, g1, beta1)
        r3 = jnp.maximum(r2 @ w3 + b3, 0.0)
        r3 = ln(r2 + r3, g2, beta2)
        return r3 @ w4 + b4

    # Check both the single-tile (B=8) and multi-tile / 2-step-grid (B=32) paths.
    for B in (8, 32):
        k_b = jax.random.fold_in(k_x, B)
        x_idx = jax.random.randint(k_b, (B, C), 0, V, dtype=jnp.int32)
        logits = jax.block_until_ready(neural_lm3_forward(x_idx, params))
        ref = reference(x_idx)
        assert logits.shape == (B, V)
        err = float(jnp.max(jnp.abs(logits - ref)))
        assert jnp.allclose(logits, ref, atol=1e-3, rtol=1e-3), \
            f"B={B}: max abs err = {err}"

    print("KERNEL_OK")
</pallas_src>

<mosaic_0001>
module attributes {stable_mosaic.version = 11 : i64} {
  func.func @_neural_lm3_kernel(%arg0: i32, %arg1: memref<8x3xi32, #tpu.memory_space<vmem>>, %arg2: memref<768x128xf32, #tpu.memory_space<vmem>>, %arg3: memref<1x128xf32, #tpu.memory_space<vmem>>, %arg4: memref<128x128xf32, #tpu.memory_space<vmem>>, %arg5: memref<1x128xf32, #tpu.memory_space<vmem>>, %arg6: memref<1x128xf32, #tpu.memory_space<vmem>>, %arg7: memref<1x128xf32, #tpu.memory_space<vmem>>, %arg8: memref<128x128xf32, #tpu.memory_space<vmem>>, %arg9: memref<1x128xf32, #tpu.memory_space<vmem>>, %arg10: memref<128x256xf32, #tpu.memory_space<vmem>>, %arg11: memref<1x256xf32, #tpu.memory_space<vmem>>, %arg12: memref<8x256xf32, #tpu.memory_space<vmem>>) attributes {dimension_semantics = [#tpu.dimension_semantics<parallel>], iteration_bounds = array<i64: 1>, scalar_prefetch = 0 : i64, scratch_operands = 0 : i64, tpu.core_type = #tpu.core_type<tc>, window_params = [{transform_indices = @transform_0, window_bounds = array<i64: 8, 3>}, {pipeline_mode = #tpu.pipeline_mode<synchronous>, transform_indices = @transform_1, window_bounds = array<i64: 768, 128>}, {pipeline_mode = #tpu.pipeline_mode<synchronous>, transform_indices = @transform_2, window_bounds = array<i64: 1, 128>}, {pipeline_mode = #tpu.pipeline_mode<synchronous>, transform_indices = @transform_3, window_bounds = array<i64: 128, 128>}, {pipeline_mode = #tpu.pipeline_mode<synchronous>, transform_indices = @transform_4, window_bounds = array<i64: 1, 128>}, {pipeline_mode = #tpu.pipeline_mode<synchronous>, transform_indices = @transform_5, window_bounds = array<i64: 1, 128>}, {pipeline_mode = #tpu.pipeline_mode<synchronous>, transform_indices = @transform_6, window_bounds = array<i64: 1, 128>}, {pipeline_mode = #tpu.pipeline_mode<synchronous>, transform_indices = @transform_7, window_bounds = array<i64: 128, 128>}, {pipeline_mode = #tpu.pipeline_mode<synchronous>, transform_indices = @transform_8, window_bounds = array<i64: 1, 128>}, {pipeline_mode = #tpu.pipeline_mode<synchronous>, transform_indices = @transform_9, window_bounds = array<i64: 128, 256>}, {pipeline_mode = #tpu.pipeline_mode<synchronous>, transform_indices = @transform_10, window_bounds = array<i64: 1, 256>}, {transform_indices = @transform_11, window_bounds = array<i64: 8, 256>}]} {
    %c0 = arith.constant 0 : index
    %c0_0 = arith.constant 0 : index
    %0 = vector.load %arg1[%c0, %c0_0] : memref<8x3xi32, #tpu.memory_space<vmem>>, vector<8x3xi32>
    %1 = tpu.iota {dimensions = array<i32: 1>} : vector<8x768xi32>
    %2 = vector.extract_strided_slice %0 {offsets = [0, 0], sizes = [8, 1], strides = [1, 1]} : vector<8x3xi32> to vector<8x1xi32>
    %3 = vector.broadcast %2 : vector<8x1xi32> to vector<8x768xi32>
    %4 = arith.cmpi eq, %3, %1 : vector<8x768xi32>
    %5 = vector.extract_strided_slice %0 {offsets = [0, 1], sizes = [8, 1], strides = [1, 1]} : vector<8x3xi32> to vector<8x1xi32>
    %c256_i32 = arith.constant 256 : i32
    %6 = vector.broadcast %c256_i32 : i32 to vector<8x1xi32>
    %7 = arith.addi %5, %6 : vector<8x1xi32>
    %8 = vector.broadcast %7 : vector<8x1xi32> to vector<8x768xi32>
    %9 = arith.cmpi eq, %8, %1 : vector<8x768xi32>
    %10 = arith.ori %4, %9 : vector<8x768xi1>
    %11 = vector.extract_strided_slice %0 {offsets = [0, 2], sizes = [8, 1], strides = [1, 1]} : vector<8x3xi32> to vector<8x1xi32>
    %c512_i32 = arith.constant 512 : i32
    %12 = vector.broadcast %c512_i32 : i32 to vector<8x1xi32>
    %13 = arith.addi %11, %12 : vector<8x1xi32>
    %14 = vector.broadcast %13 : vector<8x1xi32> to vector<8x768xi32>
    %15 = arith.cmpi eq, %14, %1 : vector<8x768xi32>
    %16 = arith.ori %10, %15 : vector<8x768xi1>
    %17 = arith.extui %16 : vector<8x768xi1> to vector<8x768xi32>
    %18 = arith.sitofp %17 : vector<8x768xi32> to vector<8x768xf32>
    %c0_1 = arith.constant 0 : index
    %c0_2 = arith.constant 0 : index
    %19 = vector.load %arg2[%c0_1, %c0_2] : memref<768x128xf32, #tpu.memory_space<vmem>>, vector<768x128xf32>
    %cst = arith.constant dense<0.000000e+00> : vector<8x128xf32>
    %20 = tpu.matmul %18, %19, %cst {dimension_numbers = #tpu.dot_dimension_numbers<[1], [0], [0], [1], [0, 0, 1, 1], [], []>} : vector<8x768xf32>, vector<768x128xf32>, vector<8x128xf32> -> vector<8x128xf32>
    %c0_3 = arith.constant 0 : index
    %c0_4 = arith.constant 0 : index
    %21 = vector.load %arg3[%c0_3, %c0_4] : memref<1x128xf32, #tpu.memory_space<vmem>>, vector<1x128xf32>
    %22 = vector.broadcast %21 : vector<1x128xf32> to vector<8x128xf32>
    %23 = arith.addf %20, %22 : vector<8x128xf32>
    %cst_5 = arith.constant 0.000000e+00 : f32
    %24 = vector.broadcast %cst_5 : f32 to vector<8x128xf32>
    %25 = arith.maximumf %23, %24 : vector<8x128xf32>
    %c0_6 = arith.constant 0 : index
    %c0_7 = arith.constant 0 : index
    %26 = vector.load %arg4[%c0_6, %c0_7] : memref<128x128xf32, #tpu.memory_space<vmem>>, vector<128x128xf32>
    %cst_8 = arith.constant dense<0.000000e+00> : vector<8x128xf32>
    %27 = tpu.matmul %25, %26, %cst_8 {dimension_numbers = #tpu.dot_dimension_numbers<[1], [0], [0], [1], [0, 0, 1, 1], [], []>} : vector<8x128xf32>, vector<128x128xf32>, vector<8x128xf32> -> vector<8x128xf32>
    %c0_9 = arith.constant 0 : index
    %c0_10 = arith.constant 0 : index
    %28 = vector.load %arg5[%c0_9, %c0_10] : memref<1x128xf32, #tpu.memory_space<vmem>>, vector<1x128xf32>
    %29 = vector.broadcast %28 : vector<1x128xf32> to vector<8x128xf32>
    %30 = arith.addf %27, %29 : vector<8x128xf32>
    %cst_11 = arith.constant 0.000000e+00 : f32
    %31 = vector.broadcast %cst_11 : f32 to vector<8x128xf32>
    %32 = arith.maximumf %30, %31 : vector<8x128xf32>
    %33 = arith.addf %25, %32 : vector<8x128xf32>
    %c0_12 = arith.constant 0 : index
    %c0_13 = arith.constant 0 : index
    %34 = vector.load %arg6[%c0_12, %c0_13] : memref<1x128xf32, #tpu.memory_space<vmem>>, vector<1x128xf32>
    %c0_14 = arith.constant 0 : index
    %c0_15 = arith.constant 0 : index
    %35 = vector.load %arg7[%c0_14, %c0_15] : memref<1x128xf32, #tpu.memory_space<vmem>>, vector<1x128xf32>
    %cst_16 = arith.constant dense<0.000000e+00> : vector<8xf32>
    %36 = vector.multi_reduction <add>, %33, %cst_16 [1] : vector<8x128xf32> to vector<8xf32>
    %37 = vector.shape_cast %36 : vector<8xf32> to vector<8x1xf32>
    %cst_17 = arith.constant 1.280000e+02 : f32
    %38 = vector.broadcast %cst_17 : f32 to vector<8x1xf32>
    %39 = arith.divf %37, %38 : vector<8x1xf32>
    %40 = vector.broadcast %39 : vector<8x1xf32> to vector<8x128xf32>
    %41 = arith.subf %33, %40 : vector<8x128xf32>
    %42 = arith.mulf %41, %41 : vector<8x128xf32>
    %cst_18 = arith.constant dense<0.000000e+00> : vector<8xf32>
    %43 = vector.multi_reduction <add>, %42, %cst_18 [1] : vector<8x128xf32> to vector<8xf32>
    %44 = vector.shape_cast %43 : vector<8xf32> to vector<8x1xf32>
    %cst_19 = arith.constant 1.280000e+02 : f32
    %45 = vector.broadcast %cst_19 : f32 to vector<8x1xf32>
    %46 = arith.divf %44, %45 : vector<8x1xf32>
    %cst_20 = arith.constant 9.99999974E-6 : f32
    %47 = vector.broadcast %cst_20 : f32 to vector<8x1xf32>
    %48 = arith.addf %46, %47 : vector<8x1xf32>
    %49 = math.rsqrt %48 : vector<8x1xf32>
    %50 = vector.broadcast %49 : vector<8x1xf32> to vector<8x128xf32>
    %51 = arith.mulf %41, %50 : vector<8x128xf32>
    %52 = vector.broadcast %34 : vector<1x128xf32> to vector<8x128xf32>
    %53 = arith.mulf %51, %52 : vector<8x128xf32>
    %54 = vector.broadcast %35 : vector<1x128xf32> to vector<8x128xf32>
    %55 = arith.addf %53, %54 : vector<8x128xf32>
    %c0_21 = arith.constant 0 : index
    %c0_22 = arith.constant 0 : index
    %56 = vector.load %arg8[%c0_21, %c0_22] : memref<128x128xf32, #tpu.memory_space<vmem>>, vector<128x128xf32>
    %cst_23 = arith.constant dense<0.000000e+00> : vector<8x128xf32>
    %57 = tpu.matmul %55, %56, %cst_23 {dimension_numbers = #tpu.dot_dimension_numbers<[1], [0], [0], [1], [0, 0, 1, 1], [], []>} : vector<8x128xf32>, vector<128x128xf32>, vector<8x128xf32> -> vector<8x128xf32>
    %c0_24 = arith.constant 0 : index
    %c0_25 = arith.constant 0 : index
    %58 = vector.load %arg9[%c0_24, %c0_25] : memref<1x128xf32, #tpu.memory_space<vmem>>, vector<1x128xf32>
    %59 = vector.broadcast %58 : vector<1x128xf32> to vector<8x128xf32>
    %60 = arith.addf %57, %59 : vector<8x128xf32>
    %cst_26 = arith.constant 0.000000e+00 : f32
    %61 = vector.broadcast %cst_26 : f32 to vector<8x128xf32>
    %62 = arith.maximumf %60, %61 : vector<8x128xf32>
    %63 = arith.addf %55, %62 : vector<8x128xf32>
    %cst_27 = arith.constant dense<0.000000e+00> : vector<8xf32>
    %64 = vector.multi_reduction <add>, %63, %cst_27 [1] : vector<8x128xf32> to vector<8xf32>
    %65 = vector.shape_cast %64 : vector<8xf32> to vector<8x1xf32>
    %cst_28 = arith.constant 1.280000e+02 : f32
    %66 = vector.broadcast %cst_28 : f32 to vector<8x1xf32>
    %67 = arith.divf %65, %66 : vector<8x1xf32>
    %68 = vector.broadcast %67 : vector<8x1xf32> to vector<8x128xf32>
    %69 = arith.subf %63, %68 : vector<8x128xf32>
    %70 = arith.mulf %69, %69 : vector<8x128xf32>
    %cst_29 = arith.constant dense<0.000000e+00> : vector<8xf32>
    %71 = vector.multi_reduction <add>, %70, %cst_29 [1] : vector<8x128xf32> to vector<8xf32>
    %72 = vector.shape_cast %71 : vector<8xf32> to vector<8x1xf32>
    %cst_30 = arith.constant 1.280000e+02 : f32
    %73 = vector.broadcast %cst_30 : f32 to vector<8x1xf32>
    %74 = arith.divf %72, %73 : vector<8x1xf32>
    %cst_31 = arith.constant 9.99999974E-6 : f32
    %75 = vector.broadcast %cst_31 : f32 to vector<8x1xf32>
    %76 = arith.addf %74, %75 : vector<8x1xf32>
    %77 = math.rsqrt %76 : vector<8x1xf32>
    %78 = vector.broadcast %77 : vector<8x1xf32> to vector<8x128xf32>
    %79 = arith.mulf %69, %78 : vector<8x128xf32>
    %c0_32 = arith.constant 0 : index
    %c0_33 = arith.constant 0 : index
    %80 = vector.load %arg10[%c0_32, %c0_33] : memref<128x256xf32, #tpu.memory_space<vmem>>, vector<128x256xf32>
    %cst_34 = arith.constant dense<0.000000e+00> : vector<8x256xf32>
    %81 = tpu.matmul %79, %80, %cst_34 {dimension_numbers = #tpu.dot_dimension_numbers<[1], [0], [0], [1], [0, 0, 1, 1], [], []>} : vector<8x128xf32>, vector<128x256xf32>, vector<8x256xf32> -> vector<8x256xf32>
    %c0_35 = arith.constant 0 : index
    %c0_36 = arith.constant 0 : index
    %82 = vector.load %arg11[%c0_35, %c0_36] : memref<1x256xf32, #tpu.memory_space<vmem>>, vector<1x256xf32>
    %83 = vector.broadcast %82 : vector<1x256xf32> to vector<8x256xf32>
    %84 = arith.addf %81, %83 : vector<8x256xf32>
    %c0_37 = arith.constant 0 : index
    %c0_38 = arith.constant 0 : index
    %85 = vector.load %arg12[%c0_37, %c0_38] : memref<8x256xf32, #tpu.memory_space<vmem>>, vector<8x256xf32>
    tpu.vector_store %arg12[%c0_37, %c0_38], %84 {strides = array<i32>} : memref<8x256xf32, #tpu.memory_space<vmem>>, vector<8x256xf32>,
    return
  }
  func.func @transform_0(%arg0: i32) -> (i32, i32) {
    %c0_i32 = arith.constant 0 : i32
    %c0_i32_0 = arith.constant 0 : i32
    return %arg0, %c0_i32 : i32, i32
  }
  func.func @transform_1(%arg0: i32) -> (i32, i32) {
    %c0_i32 = arith.constant 0 : i32
    %c0_i32_0 = arith.constant 0 : i32
    %c0_i32_1 = arith.constant 0 : i32
    return %c0_i32, %c0_i32_0 : i32, i32
  }
  func.func @transform_2(%arg0: i32) -> (i32, i32) {
    %c0_i32 = arith.constant 0 : i32
    %c0_i32_0 = arith.constant 0 : i32
    %c0_i32_1 = arith.constant 0 : i32
    return %c0_i32, %c0_i32_0 : i32, i32
  }
  func.func @transform_3(%arg0: i32) -> (i32, i32) {
    %c0_i32 = arith.constant 0 : i32
    %c0_i32_0 = arith.constant 0 : i32
    %c0_i32_1 = arith.constant 0 : i32
    return %c0_i32, %c0_i32_0 : i32, i32
  }
  func.func @transform_4(%arg0: i32) -> (i32, i32) {
    %c0_i32 = arith.constant 0 : i32
    %c0_i32_0 = arith.constant 0 : i32
    %c0_i32_1 = arith.constant 0 : i32
    return %c0_i32, %c0_i32_0 : i32, i32
  }
  func.func @transform_5(%arg0: i32) -> (i32, i32) {
    %c0_i32 = arith.constant 0 : i32
    %c0_i32_0 = arith.constant 0 : i32
    %c0_i32_1 = arith.constant 0 : i32
    return %c0_i32, %c0_i32_0 : i32, i32
  }
  func.func @transform_6(%arg0: i32) -> (i32, i32) {
    %c0_i32 = arith.constant 0 : i32
    %c0_i32_0 = arith.constant 0 : i32
    %c0_i32_1 = arith.constant 0 : i32
    return %c0_i32, %c0_i32_0 : i32, i32
  }
  func.func @transform_7(%arg0: i32) -> (i32, i32) {
    %c0_i32 = arith.constant 0 : i32
    %c0_i32_0 = arith.constant 0 : i32
    %c0_i32_1 = arith.constant 0 : i32
    return %c0_i32, %c0_i32_0 : i32, i32
  }
  func.func @transform_8(%arg0: i32) -> (i32, i32) {
    %c0_i32 = arith.constant 0 : i32
    %c0_i32_0 = arith.constant 0 : i32
    %c0_i32_1 = arith.constant 0 : i32
    return %c0_i32, %c0_i32_0 : i32, i32
  }
  func.func @transform_9(%arg0: i32) -> (i32, i32) {
    %c0_i32 = arith.constant 0 : i32
    %c0_i32_0 = arith.constant 0 : i32
    %c0_i32_1 = arith.constant 0 : i32
    return %c0_i32, %c0_i32_0 : i32, i32
  }
  func.func @transform_10(%arg0: i32) -> (i32, i32) {
    %c0_i32 = arith.constant 0 : i32
    %c0_i32_0 = arith.constant 0 : i32
    %c0_i32_1 = arith.constant 0 : i32
    return %c0_i32, %c0_i32_0 : i32, i32
  }
  func.func @transform_11(%arg0: i32) -> (i32, i32) {
    %c0_i32 = arith.constant 0 : i32
    %c0_i32_0 = arith.constant 0 : i32
    return %arg0, %c0_i32 : i32, i32
  }
}

</mosaic_0001>

<llo_original>
// kernel: tpu_custom_call.1
$region0: #{tpu_custom_call.1}
  #allocation0 [shape = 'u32[]', space=smem, size = 0x4, offset = 0x4, fixed_abs, tag = 'smem constant byte address 0x4 - core index']
  #allocation1 [shape = 'u32[144,128]{1,0:T(1,128)}', space=vmem, size = 0x12000, scoped, tag = 'internal scratch']
  %s0 = inlined_call_operand.vmem [shape: s32[8,3], index: 0, kind: input, shape index: {}]
  %s1 = inlined_call_operand.hbm [shape: f32[768,128], index: 1, kind: input, shape index: {}]
  %s2 = inlined_call_operand.vmem [shape: f32[1,128], index: 2, kind: input, shape index: {}]
  %s3 = inlined_call_operand.hbm [shape: f32[128,128], index: 3, kind: input, shape index: {}]
  %s4 = inlined_call_operand.vmem [shape: f32[1,128], index: 4, kind: input, shape index: {}]
  %s5 = inlined_call_operand.vmem [shape: f32[1,128], index: 5, kind: input, shape index: {}]
  %s6 = inlined_call_operand.vmem [shape: f32[1,128], index: 6, kind: input, shape index: {}]
  %s7 = inlined_call_operand.hbm [shape: f32[128,128], index: 7, kind: input, shape index: {}]
  %s8 = inlined_call_operand.vmem [shape: f32[1,128], index: 8, kind: input, shape index: {}]
  %s9 = inlined_call_operand.hbm [shape: f32[128,256], index: 9, kind: input, shape index: {}]
  %s10 = inlined_call_operand.vmem [shape: f32[1,256], index: 10, kind: input, shape index: {}]
  %s11 = inlined_call_operand.hbm [shape: f32[8,256], index: 11, kind: output, shape index: {}]
  %s12 = sld [smem:[#allocation0]]
  $region70: #{tpu_custom_call.1} parent=0
    _
  %s14 = ssub.s32 1, %s12
  %s15 = scalar_select 0, %s14, %s12
  $region1: #{tpu_custom_call.1} parent=0
    #allocation2 [shape = 'u8[393216]{0}', space=vmem, size = 0x60000, scoped, tag = 'input window, operand 1, single buffered']
    #allocation3 [shape = 's32[1]{0}', space=sflag, size = 0x4, scoped, tag = 'scoped memory for tpu_custom_call.1']
    #allocation4 [shape = 's32[1]{0}', space=sflag, size = 0x4, scoped, tag = 'scoped memory for tpu_custom_call.1']
    #allocation5 [shape = 'u8[65536]{0}', space=vmem, size = 0x10000, scoped, tag = 'input window, operand 3, single buffered']
    #allocation6 [shape = 's32[1]{0}', space=sflag, size = 0x4, scoped, tag = 'scoped memory for tpu_custom_call.1']
    #allocation7 [shape = 'u8[65536]{0}', space=vmem, size = 0x10000, scoped, tag = 'input window, operand 7, single buffered']
    #allocation8 [shape = 'u8[131072]{0}', space=vmem, size = 0x20000, scoped, tag = 'input window, operand 9, single buffered']
    #allocation9 [shape = 's32[1]{0}', space=sflag, size = 0x4, scoped, tag = 'scoped memory for tpu_custom_call.1']
    #allocation10 [shape = 'u8[8192]{0}', space=vmem, size = 0x2000, scoped, tag = 'output window, operand 0, single buffered']
    %16 = vsyncpa [#allocation3], 0
    %17 = vsyncpa [#allocation6], 0
    %18 = vsyncpa [#allocation9], 0
    %19 = vsyncpa [#allocation4], 0
    // Predicated region
    $region2: #{tpu_custom_call.1} parent=1 // pred_check
      _
    $region3: #{tpu_custom_call.1} parent=1 // pred_check_branch
      %21 = sbr.rel (0) target = $region5
    $region4: #{tpu_custom_call.1} parent=1 // pred_region
      _
    $region5: #{tpu_custom_call.1} parent=1 // pred_fallthru
      _
    // Predicated region
    $region6: #{tpu_custom_call.1} parent=1 // pred_check
      _
    $region7: #{tpu_custom_call.1} parent=1 // pred_check_branch
      %23 = sbr.rel (0) target = $region9
    $region8: #{tpu_custom_call.1} parent=1 // pred_region
      %s25 = ssub.s32 12288, 12288
      %26 = vsyncadd [#allocation3], %s25
      %s27 = sshll.u32 [#allocation2], 4
      %s28 = int_to_ptr.vmem [resolvable:$true] %s27
      %33 = dma.hbm_to_vmem [thread:$0]  %s1, 12288, %s28, [#allocation3], 128, 128, 8
    $region9: #{tpu_custom_call.1} parent=1 // pred_fallthru
      _
    // Predicated region
    $region10: #{tpu_custom_call.1} parent=1 // pred_check
      _
    $region11: #{tpu_custom_call.1} parent=1 // pred_check_branch
      %35 = sbr.rel (0) target = $region13
    $region12: #{tpu_custom_call.1} parent=1 // pred_region
      _
    $region13: #{tpu_custom_call.1} parent=1 // pred_fallthru
      _
    // Predicated region
    $region14: #{tpu_custom_call.1} parent=1 // pred_check
      _
    $region15: #{tpu_custom_call.1} parent=1 // pred_check_branch
      %37 = sbr.rel (0) target = $region17
    $region16: #{tpu_custom_call.1} parent=1 // pred_region
      %s39 = ssub.s32 2048, 2048
      %40 = vsyncadd [#allocation6], %s39
      %s41 = sshll.u32 [#allocation5], 4
      %s42 = int_to_ptr.vmem [resolvable:$true] %s41
      %47 = dma.hbm_to_vmem [thread:$0]  %s3, 2048, %s42, [#allocation6], 128, 128, 8
    $region17: #{tpu_custom_call.1} parent=1 // pred_fallthru
      _
    // Predicated region
    $region18: #{tpu_custom_call.1} parent=1 // pred_check
      _
    $region19: #{tpu_custom_call.1} parent=1 // pred_check_branch
      %49 = sbr.rel (0) target = $region21
    $region20: #{tpu_custom_call.1} parent=1 // pred_region
      _
    $region21: #{tpu_custom_call.1} parent=1 // pred_fallthru
      _
    // Predicated region
    $region22: #{tpu_custom_call.1} parent=1 // pred_check
      _
    $region23: #{tpu_custom_call.1} parent=1 // pred_check_branch
      %51 = sbr.rel (0) target = $region25
    $region24: #{tpu_custom_call.1} parent=1 // pred_region
      _
    $region25: #{tpu_custom_call.1} parent=1 // pred_fallthru
      _
    // Predicated region
    $region26: #{tpu_custom_call.1} parent=1 // pred_check
      _
    $region27: #{tpu_custom_call.1} parent=1 // pred_check_branch
      %53 = sbr.rel (0) target = $region29
    $region28: #{tpu_custom_call.1} parent=1 // pred_region
      _
    $region29: #{tpu_custom_call.1} parent=1 // pred_fallthru
      _
    // Predicated region
    $region30: #{tpu_custom_call.1} parent=1 // pred_check
      _
    $region31: #{tpu_custom_call.1} parent=1 // pred_check_branch
      %55 = sbr.rel (0) target = $region33
    $region32: #{tpu_custom_call.1} parent=1 // pred_region
      %s57 = ssub.s32 2048, 2048
      %58 = vsyncadd [#allocation6], %s57
      %s59 = sshll.u32 [#allocation7], 4
      %s60 = int_to_ptr.vmem [resolvable:$true] %s59
      %65 = dma.hbm_to_vmem [thread:$0]  %s7, 2048, %s60, [#allocation6], 128, 128, 8
    $region33: #{tpu_custom_call.1} parent=1 // pred_fallthru
      _
    // Predicated region
    $region34: #{tpu_custom_call.1} parent=1 // pred_check
      _
    $region35: #{tpu_custom_call.1} parent=1 // pred_check_branch
      %67 = sbr.rel (0) target = $region37
    $region36: #{tpu_custom_call.1} parent=1 // pred_region
      _
    $region37: #{tpu_custom_call.1} parent=1 // pred_fallthru
      _
    // Predicated region
    $region38: #{tpu_custom_call.1} parent=1 // pred_check
      _
    $region39: #{tpu_custom_call.1} parent=1 // pred_check_branch
      %69 = sbr.rel (0) target = $region41
    $region40: #{tpu_custom_call.1} parent=1 // pred_region
      %s71 = ssub.s32 4096, 4096
      %72 = vsyncadd [#allocation9], %s71
      %s73 = sshll.u32 [#allocation8], 4
      %s74 = int_to_ptr.vmem [resolvable:$true] %s73
      %79 = dma.hbm_to_vmem [thread:$0]  %s9, 4096, %s74, [#allocation9], 256, 256, 16
    $region41: #{tpu_custom_call.1} parent=1 // pred_fallthru
      _
    // Predicated region
    $region42: #{tpu_custom_call.1} parent=1 // pred_check
      _
    $region43: #{tpu_custom_call.1} parent=1 // pred_check_branch
      %81 = sbr.rel (0) target = $region45
    $region44: #{tpu_custom_call.1} parent=1 // pred_region
      _
    $region45: #{tpu_custom_call.1} parent=1 // pred_fallthru
      _
    // Predicated region
    $region46: #{tpu_custom_call.1} parent=1 // pred_check
      _
    $region47: #{tpu_custom_call.1} parent=1 // pred_check_branch
      %83 = sbr.rel (0) target = $region49
    $region48: #{tpu_custom_call.1} parent=1 // pred_region
      %84 = dma.done [#allocation3], 12288
    $region49: #{tpu_custom_call.1} parent=1 // pred_fallthru
      _
    // Predicated region
    $region50: #{tpu_custom_call.1} parent=1 // pred_check
      _
    $region51: #{tpu_custom_call.1} parent=1 // pred_check_branch
      %86 = sbr.rel (0) target = $region53
    $region52: #{tpu_custom_call.1} parent=1 // pred_region
      %87 = dma.done [#allocation6], 2048
    $region53: #{tpu_custom_call.1} parent=1 // pred_fallthru
      _
    // Predicated region
    $region54: #{tpu_custom_call.1} parent=1 // pred_check
      _
    $region55: #{tpu_custom_call.1} parent=1 // pred_check_branch
      %89 = sbr.rel (0) target = $region57
    $region56: #{tpu_custom_call.1} parent=1 // pred_region
      %90 = dma.done [#allocation6], 2048
    $region57: #{tpu_custom_call.1} parent=1 // pred_fallthru
      _
    // Predicated region
    $region58: #{tpu_custom_call.1} parent=1 // pred_check
      _
    $region59: #{tpu_custom_call.1} parent=1 // pred_check_branch
      %92 = sbr.rel (0) target = $region61
    $region60: #{tpu_custom_call.1} parent=1 // pred_region
      %93 = dma.done [#allocation9], 4096
    $region61: #{tpu_custom_call.1} parent=1 // pred_fallthru
      _
    %v94 = vld [vmem:[%s0] sm:$0xff]
    %v95 = vlaneseq
    %v96 = vand.u32 %v95, 127
    %v97 = vadd.s32 %v96, 128
    %v98 = vadd.s32 %v96, 256
    %v99 = vadd.s32 %v96, 384
    %v100 = vadd.s32 %v96, 512
    %v101 = vadd.s32 %v96, 640
    %102 = vset.pattern.permute.xlu0 0
    %103 = vperm.xlu0 %102, %v94
    %v104 = vpop.permute.xlu0 %103
    %vm105 = vcmp.eq.s32.totalorder %v104, %v96
    %vm106 = vcmp.eq.s32.totalorder %v104, %v97
    %vm107 = vcmp.eq.s32.totalorder %v104, %v98
    %vm108 = vcmp.eq.s32.totalorder %v104, %v99
    %vm109 = vcmp.eq.s32.totalorder %v104, %v100
    %vm110 = vcmp.eq.s32.totalorder %v104, %v101
    %v111 = vadd.s32 %v94, 256
    %112 = vset.pattern.permute.xlu0 1
    %113 = vperm.xlu0 %112, %v111
    %v114 = vpop.permute.xlu0 %113
    %vm115 = vcmp.eq.s32.totalorder %v114, %v96
    %vm116 = vcmp.eq.s32.totalorder %v114, %v97
    %vm117 = vcmp.eq.s32.totalorder %v114, %v98
    %vm118 = vcmp.eq.s32.totalorder %v114, %v99
    %vm119 = vcmp.eq.s32.totalorder %v114, %v100
    %vm120 = vcmp.eq.s32.totalorder %v114, %v101
    %vm121 = vmor %vm105, %vm115
    %vm122 = vmor %vm106, %vm116
    %vm123 = vmor %vm107, %vm117
    %vm124 = vmor %vm108, %vm118
    %vm125 = vmor %vm109, %vm119
    %vm126 = vmor %vm110, %vm120
    %v127 = vadd.s32 %v94, 512
    %128 = vset.pattern.permute.xlu0 2
    %129 = vperm.xlu0 %128, %v127
    %v130 = vpop.permute.xlu0 %129
    %vm131 = vcmp.eq.s32.totalorder %v130, %v96
    %vm132 = vcmp.eq.s32.totalorder %v130, %v97
    %vm133 = vcmp.eq.s32.totalorder %v130, %v98
    %vm134 = vcmp.eq.s32.totalorder %v130, %v99
    %vm135 = vcmp.eq.s32.totalorder %v130, %v100
    %vm136 = vcmp.eq.s32.totalorder %v130, %v101
    %vm137 = vmor %vm121, %vm131
    %vm138 = vmor %vm122, %vm132
    %vm139 = vmor %vm123, %vm133
    %vm140 = vmor %vm124, %vm134
    %vm141 = vmor %vm125, %vm135
    %vm142 = vmor %vm126, %vm136
    %v143 = vsel %vm137, 1, 0
    %v144 = vsel %vm138, 1, 0
    %v145 = vsel %vm139, 1, 0
    %v146 = vsel %vm140, 1, 0
    %v147 = vsel %vm141, 1, 0
    %v148 = vsel %vm142, 1, 0
    %v149 = vcvt.s32.f32 %v143
    %v150 = vcvt.s32.f32 %v144
    %v151 = vcvt.s32.f32 %v145
    %v152 = vcvt.s32.f32 %v146
    %v153 = vcvt.s32.f32 %v147
    %v154 = vcvt.s32.f32 %v148
    %v155 = vld [vmem:[#allocation2] sm:$0xff]
    %v156 = vld [vmem:[#allocation2 + $0x8] sm:$0xff]
    %v157 = vld [vmem:[#allocation2 + $0x10] sm:$0xff]
    %v158 = vld [vmem:[#allocation2 + $0x18] sm:$0xff]
    %v159 = vld [vmem:[#allocation2 + $0x20] sm:$0xff]
    %v160 = vld [vmem:[#allocation2 + $0x28] sm:$0xff]
    %v161 = vld [vmem:[#allocation2 + $0x30] sm:$0xff]
    %v162 = vld [vmem:[#allocation2 + $0x38] sm:$0xff]
    %v163 = vld [vmem:[#allocation2 + $0x40] sm:$0xff]
    %v164 = vld [vmem:[#allocation2 + $0x48] sm:$0xff]
    %v165 = vld [vmem:[#allocation2 + $0x50] sm:$0xff]
    %v166 = vld [vmem:[#allocation2 + $0x58] sm:$0xff]
    %v167 = vld [vmem:[#allocation2 + $0x60] sm:$0xff]
    %v168 = vld [vmem:[#allocation2 + $0x68] sm:$0xff]
    %v169 = vld [vmem:[#allocation2 + $0x70] sm:$0xff]
    %v170 = vld [vmem:[#allocation2 + $0x78] sm:$0xff]
    %v171 = vld [vmem:[#allocation2 + $0x80] sm:$0xff]
    %v172 = vld [vmem:[#allocation2 + $0x88] sm:$0xff]
    %v173 = vld [vmem:[#allocation2 + $0x90] sm:$0xff]
    %v174 = vld [vmem:[#allocation2 + $0x98] sm:$0xff]
    %v175 = vld [vmem:[#allocation2 + $0xa0] sm:$0xff]
    %v176 = vld [vmem:[#allocation2 + $0xa8] sm:$0xff]
    %v177 = vld [vmem:[#allocation2 + $0xb0] sm:$0xff]
    %v178 = vld [vmem:[#allocation2 + $0xb8] sm:$0xff]
    %v179 = vld [vmem:[#allocation2 + $0xc0] sm:$0xff]
    %v180 = vld [vmem:[#allocation2 + $0xc8] sm:$0xff]
    %v181 = vld [vmem:[#allocation2 + $0xd0] sm:$0xff]
    %v182 = vld [vmem:[#allocation2 + $0xd8] sm:$0xff]
    %v183 = vld [vmem:[#allocation2 + $0xe0] sm:$0xff]
    %v184 = vld [vmem:[#allocation2 + $0xe8] sm:$0xff]
    %v185 = vld [vmem:[#allocation2 + $0xf0] sm:$0xff]
    %v186 = vld [vmem:[#allocation2 + $0xf8] sm:$0xff]
    %v187 = vld [vmem:[#allocation2 + $0x100] sm:$0xff]
    %v188 = vld [vmem:[#allocation2 + $0x108] sm:$0xff]
    %v189 = vld [vmem:[#allocation2 + $0x110] sm:$0xff]
    %v190 = vld [vmem:[#allocation2 + $0x118] sm:$0xff]
    %v191 = vld [vmem:[#allocation2 + $0x120] sm:$0xff]
    %v192 = vld [vmem:[#allocation2 + $0x128] sm:$0xff]
    %v193 = vld [vmem:[#allocation2 + $0x130] sm:$0xff]
    %v194 = vld [vmem:[#allocation2 + $0x138] sm:$0xff]
    %v195 = vld [vmem:[#allocation2 + $0x140] sm:$0xff]
    %v196 = vld [vmem:[#allocation2 + $0x148] sm:$0xff]
    %v197 = vld [vmem:[#allocation2 + $0x150] sm:$0xff]
    %v198 = vld [vmem:[#allocation2 + $0x158] sm:$0xff]
    %v199 = vld [vmem:[#allocation2 + $0x160] sm:$0xff]
    %v200 = vld [vmem:[#allocation2 + $0x168] sm:$0xff]
    %v201 = vld [vmem:[#allocation2 + $0x170] sm:$0xff]
    %v202 = vld [vmem:[#allocation2 + $0x178] sm:$0xff]
    %v203 = vld [vmem:[#allocation2 + $0x180] sm:$0xff]
    %v204 = vld [vmem:[#allocation2 + $0x188] sm:$0xff]
    %v205 = vld [vmem:[#allocation2 + $0x190] sm:$0xff]
    %v206 = vld [vmem:[#allocation2 + $0x198] sm:$0xff]
    %v207 = vld [vmem:[#allocation2 + $0x1a0] sm:$0xff]
    %v208 = vld [vmem:[#allocation2 + $0x1a8] sm:$0xff]
    %v209 = vld [vmem:[#allocation2 + $0x1b0] sm:$0xff]
    %v210 = vld [vmem:[#allocation2 + $0x1b8] sm:$0xff]
    %v211 = vld [vmem:[#allocation2 + $0x1c0] sm:$0xff]
    %v212 = vld [vmem:[#allocation2 + $0x1c8] sm:$0xff]
    %v213 = vld [vmem:[#allocation2 + $0x1d0] sm:$0xff]
    %v214 = vld [vmem:[#allocation2 + $0x1d8] sm:$0xff]
    %v215 = vld [vmem:[#allocation2 + $0x1e0] sm:$0xff]
    %v216 = vld [vmem:[#allocation2 + $0x1e8] sm:$0xff]
    %v217 = vld [vmem:[#allocation2 + $0x1f0] sm:$0xff]
    %v218 = vld [vmem:[#allocation2 + $0x1f8] sm:$0xff]
    %v219 = vld [vmem:[#allocation2 + $0x200] sm:$0xff]
    %v220 = vld [vmem:[#allocation2 + $0x208] sm:$0xff]
    %v221 = vld [vmem:[#allocation2 + $0x210] sm:$0xff]
    %v222 = vld [vmem:[#allocation2 + $0x218] sm:$0xff]
    %v223 = vld [vmem:[#allocation2 + $0x220] sm:$0xff]
    %v224 = vld [vmem:[#allocation2 + $0x228] sm:$0xff]
    %v225 = vld [vmem:[#allocation2 + $0x230] sm:$0xff]
    %v226 = vld [vmem:[#allocation2 + $0x238] sm:$0xff]
    %v227 = vld [vmem:[#allocation2 + $0x240] sm:$0xff]
    %v228 = vld [vmem:[#allocation2 + $0x248] sm:$0xff]
    %v229 = vld [vmem:[#allocation2 + $0x250] sm:$0xff]
    %v230 = vld [vmem:[#allocation2 + $0x258] sm:$0xff]
    %v231 = vld [vmem:[#allocation2 + $0x260] sm:$0xff]
    %v232 = vld [vmem:[#allocation2 + $0x268] sm:$0xff]
    %v233 = vld [vmem:[#allocation2 + $0x270] sm:$0xff]
    %v234 = vld [vmem:[#allocation2 + $0x278] sm:$0xff]
    %v235 = vld [vmem:[#allocation2 + $0x280] sm:$0xff]
    %v236 = vld [vmem:[#allocation2 + $0x288] sm:$0xff]
    %v237 = vld [vmem:[#allocation2 + $0x290] sm:$0xff]
    %v238 = vld [vmem:[#allocation2 + $0x298] sm:$0xff]
    %v239 = vld [vmem:[#allocation2 + $0x2a0] sm:$0xff]
    %v240 = vld [vmem:[#allocation2 + $0x2a8] sm:$0xff]
    %v241 = vld [vmem:[#allocation2 + $0x2b0] sm:$0xff]
    %v242 = vld [vmem:[#allocation2 + $0x2b8] sm:$0xff]
    %v243 = vld [vmem:[#allocation2 + $0x2c0] sm:$0xff]
    %v244 = vld [vmem:[#allocation2 + $0x2c8] sm:$0xff]
    %v245 = vld [vmem:[#allocation2 + $0x2d0] sm:$0xff]
    %v246 = vld [vmem:[#allocation2 + $0x2d8] sm:$0xff]
    %v247 = vld [vmem:[#allocation2 + $0x2e0] sm:$0xff]
    %v248 = vld [vmem:[#allocation2 + $0x2e8] sm:$0xff]
    %v249 = vld [vmem:[#allocation2 + $0x2f0] sm:$0xff]
    %v250 = vld [vmem:[#allocation2 + $0x2f8] sm:$0xff]
    %v251 = vld [vmem:[%s2] sm:$0x1]
    %v253 = vlaneseq
    %v254 = vshrl.u32 %v253, 7
    %v255 = vsub.s32 0, %v254
    %v256 = vrot.slane %v251, %v255
    %258 = vmatprep.subr.mxu0 0.0
    %259 = vmatpush1.msra.mxu0 %v170
    %260 = vmatprep.subr.mxu0 0.0
    %261 = vmatpush1.msra.mxu0 %v169
    %262 = vmatprep.subr.mxu0 0.0
    %263 = vmatpush1.msra.mxu0 %v168
    %264 = vmatprep.subr.mxu0 0.0
    %265 = vmatpush1.msra.mxu0 %v167
    %266 = vmatprep.subr.mxu0 0.0
    %267 = vmatpush1.msra.mxu0 %v166
    %268 = vmatprep.subr.mxu0 0.0
    %269 = vmatpush1.msra.mxu0 %v165
    %270 = vmatprep.subr.mxu0 0.0
    %271 = vmatpush1.msra.mxu0 %v164
    %272 = vmatprep.subr.mxu0 0.0
    %273 = vmatpush1.msra.mxu0 %v163
    %274 = vmatprep.subr.mxu0 0.0
    %275 = vmatpush1.msra.mxu0 %v162
    %276 = vmatprep.subr.mxu0 0.0
    %277 = vmatpush1.msra.mxu0 %v161
    %278 = vmatprep.subr.mxu0 0.0
    %279 = vmatpush1.msra.mxu0 %v160
    %280 = vmatprep.subr.mxu0 0.0
    %281 = vmatpush1.msra.mxu0 %v159
    %282 = vmatprep.subr.mxu0 0.0
    %283 = vmatpush1.msra.mxu0 %v158
    %284 = vmatprep.subr.mxu0 0.0
    %285 = vmatpush1.msra.mxu0 %v157
    %286 = vmatprep.subr.mxu0 0.0
    %287 = vmatpush1.msra.mxu0 %v156
    %288 = vmatprep.subr.mxu0 0.0
    %289 = vmatpush1.msra.mxu0 %v155
    %290 = vmatprep.subr.mxu0 0.0
    %291 = vmatpush2.msra.mxu0 %v186
    %292 = vmatprep.subr.mxu0 0.0
    %293 = vmatpush2.msra.mxu0 %v185
    %294 = vmatprep.subr.mxu0 0.0
    %295 = vmatpush2.msra.mxu0 %v184
    %296 = vmatprep.subr.mxu0 0.0
    %297 = vmatpush2.msra.mxu0 %v183
    %298 = vmatprep.subr.mxu0 0.0
    %299 = vmatpush2.msra.mxu0 %v182
    %300 = vmatprep.subr.mxu0 0.0
    %301 = vmatpush2.msra.mxu0 %v181
    %302 = vmatprep.subr.mxu0 0.0
    %303 = vmatpush2.msra.mxu0 %v180
    %304 = vmatprep.subr.mxu0 0.0
    %305 = vmatpush2.msra.mxu0 %v179
    %306 = vmatprep.subr.mxu0 0.0
    %307 = vmatpush2.msra.mxu0 %v178
    %308 = vmatprep.subr.mxu0 0.0
    %309 = vmatpush2.msra.mxu0 %v177
    %310 = vmatprep.subr.mxu0 0.0
    %311 = vmatpush2.msra.mxu0 %v176
    %312 = vmatprep.subr.mxu0 0.0
    %313 = vmatpush2.msra.mxu0 %v175
    %314 = vmatprep.subr.mxu0 0.0
    %315 = vmatpush2.msra.mxu0 %v174
    %316 = vmatprep.subr.mxu0 0.0
    %317 = vmatpush2.msra.mxu0 %v173
    %318 = vmatprep.subr.mxu0 0.0
    %319 = vmatpush2.msra.mxu0 %v172
    %320 = vmatprep.subr.mxu0 0.0
    %321 = vmatpush2.msra.mxu0 %v171
    %322 = vmatprep.mubr.f32.mxu0 %v150
    %323 = vmatmul.mubr.f32.gmra.mxu0 %v149
    %v324 = vpop.f32.mrf.mxu0
    %v325 = vadd.f32 %v256, %v324
    %v326 = vpop.f32.mrf.mxu0
    %327 = vdwg.mxu0
    %328 = vmatprep.subr.mxu0 0.0
    %329 = vmatpush1.msra.mxu0 %v202
    %330 = vmatprep.subr.mxu0 0.0
    %331 = vmatpush1.msra.mxu0 %v201
    %332 = vmatprep.subr.mxu0 0.0
    %333 = vmatpush1.msra.mxu0 %v200
    %334 = vmatprep.subr.mxu0 0.0
    %335 = vmatpush1.msra.mxu0 %v199
    %336 = vmatprep.subr.mxu0 0.0
    %337 = vmatpush1.msra.mxu0 %v198
    %338 = vmatprep.subr.mxu0 0.0
    %339 = vmatpush1.msra.mxu0 %v197
    %340 = vmatprep.subr.mxu0 0.0
    %341 = vmatpush1.msra.mxu0 %v196
    %342 = vmatprep.subr.mxu0 0.0
    %343 = vmatpush1.msra.mxu0 %v195
    %344 = vmatprep.subr.mxu0 0.0
    %345 = vmatpush1.msra.mxu0 %v194
    %346 = vmatprep.subr.mxu0 0.0
    %347 = vmatpush1.msra.mxu0 %v193
    %348 = vmatprep.subr.mxu0 0.0
    %349 = vmatpush1.msra.mxu0 %v192
    %350 = vmatprep.subr.mxu0 0.0
    %351 = vmatpush1.msra.mxu0 %v191
    %352 = vmatprep.subr.mxu0 0.0
    %353 = vmatpush1.msra.mxu0 %v190
    %354 = vmatprep.subr.mxu0 0.0
    %355 = vmatpush1.msra.mxu0 %v189
    %356 = vmatprep.subr.mxu0 0.0
    %357 = vmatpush1.msra.mxu0 %v188
    %358 = vmatprep.subr.mxu0 0.0
    %359 = vmatpush1.msra.mxu0 %v187
    %360 = vmatprep.subr.mxu0 0.0
    %361 = vmatpush2.msra.mxu0 %v218
    %362 = vmatprep.subr.mxu0 0.0
    %363 = vmatpush2.msra.mxu0 %v217
    %364 = vmatprep.subr.mxu0 0.0
    %365 = vmatpush2.msra.mxu0 %v216
    %366 = vmatprep.subr.mxu0 0.0
    %367 = vmatpush2.msra.mxu0 %v215
    %368 = vmatprep.subr.mxu0 0.0
    %369 = vmatpush2.msra.mxu0 %v214
    %370 = vmatprep.subr.mxu0 0.0
    %371 = vmatpush2.msra.mxu0 %v213
    %372 = vmatprep.subr.mxu0 0.0
    %373 = vmatpush2.msra.mxu0 %v212
    %374 = vmatprep.subr.mxu0 0.0
    %375 = vmatpush2.msra.mxu0 %v211
    %376 = vmatprep.subr.mxu0 0.0
    %377 = vmatpush2.msra.mxu0 %v210
    %378 = vmatprep.subr.mxu0 0.0
    %379 = vmatpush2.msra.mxu0 %v209
    %380 = vmatprep.subr.mxu0 0.0
    %381 = vmatpush2.msra.mxu0 %v208
    %382 = vmatprep.subr.mxu0 0.0
    %383 = vmatpush2.msra.mxu0 %v207
    %384 = vmatprep.subr.mxu0 0.0
    %385 = vmatpush2.msra.mxu0 %v206
    %386 = vmatprep.subr.mxu0 0.0
    %387 = vmatpush2.msra.mxu0 %v205
    %388 = vmatprep.subr.mxu0 0.0
    %389 = vmatpush2.msra.mxu0 %v204
    %390 = vmatprep.subr.mxu0 0.0
    %391 = vmatpush2.msra.mxu0 %v203
    %392 = vmatprep.mubr.f32.mxu0 %v152
    %393 = vmatmul.mubr.f32.gmra.mxu0 %v151
    %v394 = vpop.f32.mrf.mxu0
    %v395 = vadd.f32 %v325, %v394
    %v396 = vpop.f32.mrf.mxu0
    %397 = vdwg.mxu0
    %398 = vmatprep.subr.mxu0 0.0
    %399 = vmatpush1.msra.mxu0 %v234
    %400 = vmatprep.subr.mxu0 0.0
    %401 = vmatpush1.msra.mxu0 %v233
    %402 = vmatprep.subr.mxu0 0.0
    %403 = vmatpush1.msra.mxu0 %v232
    %404 = vmatprep.subr.mxu0 0.0
    %405 = vmatpush1.msra.mxu0 %v231
    %406 = vmatprep.subr.mxu0 0.0
    %407 = vmatpush1.msra.mxu0 %v230
    %408 = vmatprep.subr.mxu0 0.0
    %409 = vmatpush1.msra.mxu0 %v229
    %410 = vmatprep.subr.mxu0 0.0
    %411 = vmatpush1.msra.mxu0 %v228
    %412 = vmatprep.subr.mxu0 0.0
    %413 = vmatpush1.msra.mxu0 %v227
    %414 = vmatprep.subr.mxu0 0.0
    %415 = vmatpush1.msra.mxu0 %v226
    %416 = vmatprep.subr.mxu0 0.0
    %417 = vmatpush1.msra.mxu0 %v225
    %418 = vmatprep.subr.mxu0 0.0
    %419 = vmatpush1.msra.mxu0 %v224
    %420 = vmatprep.subr.mxu0 0.0
    %421 = vmatpush1.msra.mxu0 %v223
    %422 = vmatprep.subr.mxu0 0.0
    %423 = vmatpush1.msra.mxu0 %v222
    %424 = vmatprep.subr.mxu0 0.0
    %425 = vmatpush1.msra.mxu0 %v221
    %426 = vmatprep.subr.mxu0 0.0
    %427 = vmatpush1.msra.mxu0 %v220
    %428 = vmatprep.subr.mxu0 0.0
    %429 = vmatpush1.msra.mxu0 %v219
    %430 = vmatprep.subr.mxu0 0.0
    %431 = vmatpush2.msra.mxu0 %v250
    %432 = vmatprep.subr.mxu0 0.0
    %433 = vmatpush2.msra.mxu0 %v249
    %434 = vmatprep.subr.mxu0 0.0
    %435 = vmatpush2.msra.mxu0 %v248
    %436 = vmatprep.subr.mxu0 0.0
    %437 = vmatpush2.msra.mxu0 %v247
    %438 = vmatprep.subr.mxu0 0.0
    %439 = vmatpush2.msra.mxu0 %v246
    %440 = vmatprep.subr.mxu0 0.0
    %441 = vmatpush2.msra.mxu0 %v245
    %442 = vmatprep.subr.mxu0 0.0
    %443 = vmatpush2.msra.mxu0 %v244
    %444 = vmatprep.subr.mxu0 0.0
    %445 = vmatpush2.msra.mxu0 %v243
    %446 = vmatprep.subr.mxu0 0.0
    %447 = vmatpush2.msra.mxu0 %v242
    %448 = vmatprep.subr.mxu0 0.0
    %449 = vmatpush2.msra.mxu0 %v241
    %450 = vmatprep.subr.mxu0 0.0
    %451 = vmatpush2.msra.mxu0 %v240
    %452 = vmatprep.subr.mxu0 0.0
    %453 = vmatpush2.msra.mxu0 %v239
    %454 = vmatprep.subr.mxu0 0.0
    %455 = vmatpush2.msra.mxu0 %v238
    %456 = vmatprep.subr.mxu0 0.0
    %457 = vmatpush2.msra.mxu0 %v237
    %458 = vmatprep.subr.mxu0 0.0
    %459 = vmatpush2.msra.mxu0 %v236
    %460 = vmatprep.subr.mxu0 0.0
    %461 = vmatpush2.msra.mxu0 %v235
    %462 = vmatprep.mubr.f32.mxu0 %v154
    %463 = vmatmul.mubr.f32.gmra.mxu0 %v153
    %v464 = vpop.f32.mrf.mxu0
    %v465 = vadd.f32 %v395, %v464
    %v466 = vpop.f32.mrf.mxu0
    %467 = vdwg.mxu0
    %v468 = vmax.f32 %v465, 0.0
    %v469 = vld [vmem:[#allocation5] sm:$0xff]
    %v470 = vld [vmem:[#allocation5 + $0x8] sm:$0xff]
    %v471 = vld [vmem:[#allocation5 + $0x10] sm:$0xff]
    %v472 = vld [vmem:[#allocation5 + $0x18] sm:$0xff]
    %v473 = vld [vmem:[#allocation5 + $0x20] sm:$0xff]
    %v474 = vld [vmem:[#allocation5 + $0x28] sm:$0xff]
    %v475 = vld [vmem:[#allocation5 + $0x30] sm:$0xff]
    %v476 = vld [vmem:[#allocation5 + $0x38] sm:$0xff]
    %v477 = vld [vmem:[#allocation5 + $0x40] sm:$0xff]
    %v478 = vld [vmem:[#allocation5 + $0x48] sm:$0xff]
    %v479 = vld [vmem:[#allocation5 + $0x50] sm:$0xff]
    %v480 = vld [vmem:[#allocation5 + $0x58] sm:$0xff]
    %v481 = vld [vmem:[#allocation5 + $0x60] sm:$0xff]
    %v482 = vld [vmem:[#allocation5 + $0x68] sm:$0xff]
    %v483 = vld [vmem:[#allocation5 + $0x70] sm:$0xff]
    %v484 = vld [vmem:[#allocation5 + $0x78] sm:$0xff]
    %v485 = vld [vmem:[%s4] sm:$0x1]
    %v487 = vlaneseq
    %v488 = vshrl.u32 %v487, 7
    %v489 = vsub.s32 0, %v488
    %v490 = vrot.slane %v485, %v489
    %492 = vmatprep.subr.mxu0 0.0
    %493 = vmatpush1.msra.mxu0 %v484
    %494 = vmatprep.subr.mxu0 0.0
    %495 = vmatpush1.msra.mxu0 %v483
    %496 = vmatprep.subr.mxu0 0.0
    %497 = vmatpush1.msra.mxu0 %v482
    %498 = vmatprep.subr.mxu0 0.0
    %499 = vmatpush1.msra.mxu0 %v481
    %500 = vmatprep.subr.mxu0 0.0
    %501 = vmatpush1.msra.mxu0 %v480
    %502 = vmatprep.subr.mxu0 0.0
    %503 = vmatpush1.msra.mxu0 %v479
    %504 = vmatprep.subr.mxu0 0.0
    %505 = vmatpush1.msra.mxu0 %v478
    %506 = vmatprep.subr.mxu0 0.0
    %507 = vmatpush1.msra.mxu0 %v477
    %508 = vmatprep.subr.mxu0 0.0
    %509 = vmatpush1.msra.mxu0 %v476
    %510 = vmatprep.subr.mxu0 0.0
    %511 = vmatpush1.msra.mxu0 %v475
    %512 = vmatprep.subr.mxu0 0.0
    %513 = vmatpush1.msra.mxu0 %v474
    %514 = vmatprep.subr.mxu0 0.0
    %515 = vmatpush1.msra.mxu0 %v473
    %516 = vmatprep.subr.mxu0 0.0
    %517 = vmatpush1.msra.mxu0 %v472
    %518 = vmatprep.subr.mxu0 0.0
    %519 = vmatpush1.msra.mxu0 %v471
    %520 = vmatprep.subr.mxu0 0.0
    %521 = vmatpush1.msra.mxu0 %v470
    %522 = vmatprep.subr.mxu0 0.0
    %523 = vmatpush1.msra.mxu0 %v469
    %524 = vmatprep.subr.mxu0 0.0
    %525 = vmatpush2.msra.mxu0 0.0
    %526 = vmatprep.subr.mxu0 0.0
    %527 = vmatpush2.msra.mxu0 0.0
    %528 = vmatprep.subr.mxu0 0.0
    %529 = vmatpush2.msra.mxu0 0.0
    %530 = vmatprep.subr.mxu0 0.0
    %531 = vmatpush2.msra.mxu0 0.0
    %532 = vmatprep.subr.mxu0 0.0
    %533 = vmatpush2.msra.mxu0 0.0
    %534 = vmatprep.subr.mxu0 0.0
    %535 = vmatpush2.msra.mxu0 0.0
    %536 = vmatprep.subr.mxu0 0.0
    %537 = vmatpush2.msra.mxu0 0.0
    %538 = vmatprep.subr.mxu0 0.0
    %539 = vmatpush2.msra.mxu0 0.0
    %540 = vmatprep.subr.mxu0 0.0
    %541 = vmatpush2.msra.mxu0 0.0
    %542 = vmatprep.subr.mxu0 0.0
    %543 = vmatpush2.msra.mxu0 0.0
    %544 = vmatprep.subr.mxu0 0.0
    %545 = vmatpush2.msra.mxu0 0.0
    %546 = vmatprep.subr.mxu0 0.0
    %547 = vmatpush2.msra.mxu0 0.0
    %548 = vmatprep.subr.mxu0 0.0
    %549 = vmatpush2.msra.mxu0 0.0
    %550 = vmatprep.subr.mxu0 0.0
    %551 = vmatpush2.msra.mxu0 0.0
    %552 = vmatprep.subr.mxu0 0.0
    %553 = vmatpush2.msra.mxu0 0.0
    %554 = vmatprep.subr.mxu0 0.0
    %555 = vmatpush2.msra.mxu0 0.0
    %556 = vmatprep.mubr.f32.mxu0 0.0
    %557 = vmatmul.mubr.f32.gmra.mxu0 %v468
    %v558 = vpop.f32.mrf.mxu0
    %v559 = vadd.f32 %v490, %v558
    %v560 = vpop.f32.mrf.mxu0
    %561 = vdwg.mxu0
    %v562 = vmax.f32 %v559, 0.0
    %v563 = vadd.f32 %v468, %v562
    %v564 = vld [vmem:[%s5] sm:$0x1]
    %v565 = vld [vmem:[%s6] sm:$0x1]
    %566 = vadd.xlane.f32.xlu0 %v563
    %v567 = vpop.xlane.xlu0 %566
    %v568 = vrcp.pop 128.0
    %v569 = vmul.f32 %v567, %v568
    %v570 = vsub.f32 %v563, %v569
    %v571 = vmul.f32 %v570, %v570
    %572 = vadd.xlane.f32.xlu0 %v571
    %v573 = vpop.xlane.xlu0 %572
    %v574 = vmul.f32 %v573, %v568
    %v575 = vadd.f32 %v574, 1e-05
    %v576 = vrsqrt.pop %v575
    %v577 = vmul.f32 %v570, %v576
    %v579 = vlaneseq
    %v580 = vshrl.u32 %v579, 7
    %v581 = vsub.s32 0, %v580
    %v582 = vrot.slane %v564, %v581
    %v584 = vmul.f32 %v577, %v582
    %v586 = vlaneseq
    %v587 = vshrl.u32 %v586, 7
    %v588 = vsub.s32 0, %v587
    %v589 = vrot.slane %v565, %v588
    %v591 = vadd.f32 %v584, %v589
    %v592 = vld [vmem:[#allocation7] sm:$0xff]
    %v593 = vld [vmem:[#allocation7 + $0x8] sm:$0xff]
    %v594 = vld [vmem:[#allocation7 + $0x10] sm:$0xff]
    %v595 = vld [vmem:[#allocation7 + $0x18] sm:$0xff]
    %v596 = vld [vmem:[#allocation7 + $0x20] sm:$0xff]
    %v597 = vld [vmem:[#allocation7 + $0x28] sm:$0xff]
    %v598 = vld [vmem:[#allocation7 + $0x30] sm:$0xff]
    %v599 = vld [vmem:[#allocation7 + $0x38] sm:$0xff]
    %v600 = vld [vmem:[#allocation7 + $0x40] sm:$0xff]
    %v601 = vld [vmem:[#allocation7 + $0x48] sm:$0xff]
    %v602 = vld [vmem:[#allocation7 + $0x50] sm:$0xff]
    %v603 = vld [vmem:[#allocation7 + $0x58] sm:$0xff]
    %v604 = vld [vmem:[#allocation7 + $0x60] sm:$0xff]
    %v605 = vld [vmem:[#allocation7 + $0x68] sm:$0xff]
    %v606 = vld [vmem:[#allocation7 + $0x70] sm:$0xff]
    %v607 = vld [vmem:[#allocation7 + $0x78] sm:$0xff]
    %v608 = vld [vmem:[%s8] sm:$0x1]
    %v610 = vlaneseq
    %v611 = vshrl.u32 %v610, 7
    %v612 = vsub.s32 0, %v611
    %v613 = vrot.slane %v608, %v612
    %615 = vmatprep.subr.mxu0 0.0
    %616 = vmatpush1.msra.mxu0 %v607
    %617 = vmatprep.subr.mxu0 0.0
    %618 = vmatpush1.msra.mxu0 %v606
    %619 = vmatprep.subr.mxu0 0.0
    %620 = vmatpush1.msra.mxu0 %v605
    %621 = vmatprep.subr.mxu0 0.0
    %622 = vmatpush1.msra.mxu0 %v604
    %623 = vmatprep.subr.mxu0 0.0
    %624 = vmatpush1.msra.mxu0 %v603
    %625 = vmatprep.subr.mxu0 0.0
    %626 = vmatpush1.msra.mxu0 %v602
    %627 = vmatprep.subr.mxu0 0.0
    %628 = vmatpush1.msra.mxu0 %v601
    %629 = vmatprep.subr.mxu0 0.0
    %630 = vmatpush1.msra.mxu0 %v600
    %631 = vmatprep.subr.mxu0 0.0
    %632 = vmatpush1.msra.mxu0 %v599
    %633 = vmatprep.subr.mxu0 0.0
    %634 = vmatpush1.msra.mxu0 %v598
    %635 = vmatprep.subr.mxu0 0.0
    %636 = vmatpush1.msra.mxu0 %v597
    %637 = vmatprep.subr.mxu0 0.0
    %638 = vmatpush1.msra.mxu0 %v596
    %639 = vmatprep.subr.mxu0 0.0
    %640 = vmatpush1.msra.mxu0 %v595
    %641 = vmatprep.subr.mxu0 0.0
    %642 = vmatpush1.msra.mxu0 %v594
    %643 = vmatprep.subr.mxu0 0.0
    %644 = vmatpush1.msra.mxu0 %v593
    %645 = vmatprep.subr.mxu0 0.0
    %646 = vmatpush1.msra.mxu0 %v592
    %647 = vmatprep.subr.mxu0 0.0
    %648 = vmatpush2.msra.mxu0 0.0
    %649 = vmatprep.subr.mxu0 0.0
    %650 = vmatpush2.msra.mxu0 0.0
    %651 = vmatprep.subr.mxu0 0.0
    %652 = vmatpush2.msra.mxu0 0.0
    %653 = vmatprep.subr.mxu0 0.0
    %654 = vmatpush2.msra.mxu0 0.0
    %655 = vmatprep.subr.mxu0 0.0
    %656 = vmatpush2.msra.mxu0 0.0
    %657 = vmatprep.subr.mxu0 0.0
    %658 = vmatpush2.msra.mxu0 0.0
    %659 = vmatprep.subr.mxu0 0.0
    %660 = vmatpush2.msra.mxu0 0.0
    %661 = vmatprep.subr.mxu0 0.0
    %662 = vmatpush2.msra.mxu0 0.0
    %663 = vmatprep.subr.mxu0 0.0
    %664 = vmatpush2.msra.mxu0 0.0
    %665 = vmatprep.subr.mxu0 0.0
    %666 = vmatpush2.msra.mxu0 0.0
    %667 = vmatprep.subr.mxu0 0.0
    %668 = vmatpush2.msra.mxu0 0.0
    %669 = vmatprep.subr.mxu0 0.0
    %670 = vmatpush2.msra.mxu0 0.0
    %671 = vmatprep.subr.mxu0 0.0
    %672 = vmatpush2.msra.mxu0 0.0
    %673 = vmatprep.subr.mxu0 0.0
    %674 = vmatpush2.msra.mxu0 0.0
    %675 = vmatprep.subr.mxu0 0.0
    %676 = vmatpush2.msra.mxu0 0.0
    %677 = vmatprep.subr.mxu0 0.0
    %678 = vmatpush2.msra.mxu0 0.0
    %679 = vmatprep.mubr.f32.mxu0 0.0
    %680 = vmatmul.mubr.f32.gmra.mxu0 %v591
    %v681 = vpop.f32.mrf.mxu0
    %v682 = vadd.f32 %v613, %v681
    %v683 = vpop.f32.mrf.mxu0
    %684 = vdwg.mxu0
    %v685 = vmax.f32 %v682, 0.0
    %v686 = vadd.f32 %v591, %v685
    %687 = vadd.xlane.f32.xlu0 %v686
    %v688 = vpop.xlane.xlu0 %687
    %v689 = vmul.f32 %v688, %v568
    %v690 = vsub.f32 %v686, %v689
    %v691 = vmul.f32 %v690, %v690
    %692 = vadd.xlane.f32.xlu0 %v691
    %v693 = vpop.xlane.xlu0 %692
    %v694 = vmul.f32 %v693, %v568
    %v695 = vadd.f32 %v694, 1e-05
    %v696 = vrsqrt.pop %v695
    %v697 = vmul.f32 %v690, %v696
    %v698 = vld [vmem:[#allocation8] sm:$0xff]
    %v699 = vld [vmem:[#allocation8 + $0x8] sm:$0xff]
    %v700 = vld [vmem:[#allocation8 + $0x10] sm:$0xff]
    %v701 = vld [vmem:[#allocation8 + $0x18] sm:$0xff]
    %v702 = vld [vmem:[#allocation8 + $0x20] sm:$0xff]
    %v703 = vld [vmem:[#allocation8 + $0x28] sm:$0xff]
    %v704 = vld [vmem:[#allocation8 + $0x30] sm:$0xff]
    %v705 = vld [vmem:[#allocation8 + $0x38] sm:$0xff]
    %v706 = vld [vmem:[#allocation8 + $0x40] sm:$0xff]
    %v707 = vld [vmem:[#allocation8 + $0x48] sm:$0xff]
    %v708 = vld [vmem:[#allocation8 + $0x50] sm:$0xff]
    %v709 = vld [vmem:[#allocation8 + $0x58] sm:$0xff]
    %v710 = vld [vmem:[#allocation8 + $0x60] sm:$0xff]
    %v711 = vld [vmem:[#allocation8 + $0x68] sm:$0xff]
    %v712 = vld [vmem:[#allocation8 + $0x70] sm:$0xff]
    %v713 = vld [vmem:[#allocation8 + $0x78] sm:$0xff]
    %v714 = vld [vmem:[#allocation8 + $0x80] sm:$0xff]
    %v715 = vld [vmem:[#allocation8 + $0x88] sm:$0xff]
    %v716 = vld [vmem:[#allocation8 + $0x90] sm:$0xff]
    %v717 = vld [vmem:[#allocation8 + $0x98] sm:$0xff]
    %v718 = vld [vmem:[#allocation8 + $0xa0] sm:$0xff]
    %v719 = vld [vmem:[#allocation8 + $0xa8] sm:$0xff]
    %v720 = vld [vmem:[#allocation8 + $0xb0] sm:$0xff]
    %v721 = vld [vmem:[#allocation8 + $0xb8] sm:$0xff]
    %v722 = vld [vmem:[#allocation8 + $0xc0] sm:$0xff]
    %v723 = vld [vmem:[#allocation8 + $0xc8] sm:$0xff]
    %v724 = vld [vmem:[#allocation8 + $0xd0] sm:$0xff]
    %v725 = vld [vmem:[#allocation8 + $0xd8] sm:$0xff]
    %v726 = vld [vmem:[#allocation8 + $0xe0] sm:$0xff]
    %v727 = vld [vmem:[#allocation8 + $0xe8] sm:$0xff]
    %v728 = vld [vmem:[#allocation8 + $0xf0] sm:$0xff]
    %v729 = vld [vmem:[#allocation8 + $0xf8] sm:$0xff]
    %v730 = vld [vmem:[%s10] sm:$0x3]
    %v732 = vlaneseq
    %v733 = vshrl.u32 %v732, 7
    %v734 = vsub.s32 0, %v733
    %v735 = vrot.slane %v730, %v734
    %v736 = vlaneseq
    %v737 = vshrl.u32 %v736, 7
    %v738 = vsub.s32 1, %v737
    %v739 = vrot.slane %v730, %v738
    %742 = vmatprep.subr.mxu0 %v729
    %743 = vmatpush1.msra.mxu0 %v728
    %744 = vmatprep.subr.mxu0 %v727
    %745 = vmatpush1.msra.mxu0 %v726
    %746 = vmatprep.subr.mxu0 %v725
    %747 = vmatpush1.msra.mxu0 %v724
    %748 = vmatprep.subr.mxu0 %v723
    %749 = vmatpush1.msra.mxu0 %v722
    %750 = vmatprep.subr.mxu0 %v721
    %751 = vmatpush1.msra.mxu0 %v720
    %752 = vmatprep.subr.mxu0 %v719
    %753 = vmatpush1.msra.mxu0 %v718
    %754 = vmatprep.subr.mxu0 %v717
    %755 = vmatpush1.msra.mxu0 %v716
    %756 = vmatprep.subr.mxu0 %v715
    %757 = vmatpush1.msra.mxu0 %v714
    %758 = vmatprep.subr.mxu0 %v713
    %759 = vmatpush1.msra.mxu0 %v712
    %760 = vmatprep.subr.mxu0 %v711
    %761 = vmatpush1.msra.mxu0 %v710
    %762 = vmatprep.subr.mxu0 %v709
    %763 = vmatpush1.msra.mxu0 %v708
    %764 = vmatprep.subr.mxu0 %v707
    %765 = vmatpush1.msra.mxu0 %v706
    %766 = vmatprep.subr.mxu0 %v705
    %767 = vmatpush1.msra.mxu0 %v704
    %768 = vmatprep.subr.mxu0 %v703
    %769 = vmatpush1.msra.mxu0 %v702
    %770 = vmatprep.subr.mxu0 %v701
    %771 = vmatpush1.msra.mxu0 %v700
    %772 = vmatprep.subr.mxu0 %v699
    %773 = vmatpush1.msra.mxu0 %v698
    %774 = vmatprep.subr.mxu0 0.0
    %775 = vmatpush2.msra.mxu0 0.0
    %776 = vmatprep.subr.mxu0 0.0
    %777 = vmatpush2.msra.mxu0 0.0
    %778 = vmatprep.subr.mxu0 0.0
    %779 = vmatpush2.msra.mxu0 0.0
    %780 = vmatprep.subr.mxu0 0.0
    %781 = vmatpush2.msra.mxu0 0.0
    %782 = vmatprep.subr.mxu0 0.0
    %783 = vmatpush2.msra.mxu0 0.0
    %784 = vmatprep.subr.mxu0 0.0
    %785 = vmatpush2.msra.mxu0 0.0
    %786 = vmatprep.subr.mxu0 0.0
    %787 = vmatpush2.msra.mxu0 0.0
    %788 = vmatprep.subr.mxu0 0.0
    %789 = vmatpush2.msra.mxu0 0.0
    %790 = vmatprep.subr.mxu0 0.0
    %791 = vmatpush2.msra.mxu0 0.0
    %792 = vmatprep.subr.mxu0 0.0
    %793 = vmatpush2.msra.mxu0 0.0
    %794 = vmatprep.subr.mxu0 0.0
    %795 = vmatpush2.msra.mxu0 0.0
    %796 = vmatprep.subr.mxu0 0.0
    %797 = vmatpush2.msra.mxu0 0.0
    %798 = vmatprep.subr.mxu0 0.0
    %799 = vmatpush2.msra.mxu0 0.0
    %800 = vmatprep.subr.mxu0 0.0
    %801 = vmatpush2.msra.mxu0 0.0
    %802 = vmatprep.subr.mxu0 0.0
    %803 = vmatpush2.msra.mxu0 0.0
    %804 = vmatprep.subr.mxu0 0.0
    %805 = vmatpush2.msra.mxu0 0.0
    %806 = vmatprep.mubr.f32.mxu0 0.0
    %807 = vmatmul.mubr.f32.gmra.mxu0 %v697
    %v808 = vpop.f32.mrf.mxu0
    %v809 = vadd.f32 %v735, %v808
    %v810 = vpop.f32.mrf.mxu0
    %v811 = vadd.f32 %v739, %v810
    %812 = vdwg.mxu0
    %813 = vst [vmem:[#allocation10] sm:$0xff] %v809
    %814 = vst [vmem:[#allocation10 + $0x8] sm:$0xff] %v811
    // Predicated region
    $region62: #{tpu_custom_call.1} parent=1 // pred_check
      _
    $region63: #{tpu_custom_call.1} parent=1 // pred_check_branch
      %816 = sbr.rel (0) target = $region65
    $region64: #{tpu_custom_call.1} parent=1 // pred_region
      %s818 = ssub.s32 256, 256
      %819 = vsyncadd [#allocation4], %s818
      %s821 = sshll.u32 [#allocation10], 4
      %s822 = int_to_ptr.vmem [resolvable:$true] %s821
      %824 = dma.vmem_to_hbm [thread:$0]  %s822, 256, %s11, [#allocation4]
    $region65: #{tpu_custom_call.1} parent=1 // pred_fallthru
      _
    // Predicated region
    $region66: #{tpu_custom_call.1} parent=1 // pred_check
      _
    $region67: #{tpu_custom_call.1} parent=1 // pred_check_branch
      %826 = sbr.rel (0) target = $region69
    $region68: #{tpu_custom_call.1} parent=1 // pred_region
      %827 = dma.done [#allocation4], 256
    $region69: #{tpu_custom_call.1} parent=1 // pred_fallthru
      _
    %828 = vsyncpa [#allocation3], 1
    %829 = vsyncpa [#allocation6], 1
    %830 = vsyncpa [#allocation9], 1
    %831 = vsyncpa [#allocation4], 1

</llo_original>
